<compile_context>
chip_gen: v7x
topology: tpu7x:2x2x1
jax: 0.10.0
libtpu: 0.0.40
codegen_flags: <defaults>
</compile_context>

<pallas_src>
import jax
import jax.numpy as jnp
from jax.experimental import pallas as pl
from jax.experimental.pallas import tpu as pltpu


def _free_form_kernel(feat_ref, stat_ref, w1f_ref, w1s_ref, b1_ref,
                      w2_ref, b2_ref, w3_ref, b3_ref, scale_ref, o_ref):
    """One (cell-tile, batch) step: transposed 3-layer MLP + free-form scaling.

    Cells ride the 128-lane axis: matmuls are (small, small) @ (small, TC) with TC a
    multiple of 256, and the output store is a single lane-dense (Dout, TC) slab.
    Accumulation / bias / tanh / scaling are f32 regardless of the storage dtype.
    """
    f32 = jnp.float32
    h = jnp.dot(w1f_ref[...], feat_ref[...], preferred_element_type=f32)
    h = h + jnp.dot(w1s_ref[...], stat_ref[...], preferred_element_type=f32)
    h = jnp.tanh(h + b1_ref[...])                                      # (H, TC) f32
    h = h.astype(w2_ref.dtype)
    h = jnp.tanh(jnp.dot(w2_ref[...], h, preferred_element_type=f32)
                 + b2_ref[...])                                        # (H, TC) f32
    h = h.astype(w3_ref.dtype)
    y = jnp.dot(w3_ref[...], h, preferred_element_type=f32) + b3_ref[...]   # (Dout, TC)

    # Broadcast the (V, TC) free-form scale across F inside VMEM (no F-fold HBM repeat).
    s = scale_ref[...].astype(f32)                                     # (V, TC)
    v_dim = s.shape[0]
    f_dim = y.shape[0] // v_dim
    tc = y.shape[1]
    scale_full = jnp.concatenate(
        [jnp.broadcast_to(s[v:v + 1, :], (f_dim, tc)) for v in range(v_dim)], axis=0)
    o_ref[...] = (y * scale_full).astype(o_ref.dtype)                  # lane-dense store


def free_form_term_forward(u, t, domain, params, *,
                           stationary=True, autonomous=True,
                           tile_cells=4096, compute_dtype=jnp.bfloat16):
    """FreeFormTerm.forward.  Returns messages of shape (batch, cell, vertex, feature)."""
    T = domain["triangulation"]                 # (C, V) int32 node indices
    vpos = domain["cell_local_vertex_pos"]      # (C, V, S)
    ffd = domain["free_form_data"]              # (V, C)
    B, N, F = u.shape
    C, V = T.shape
    S = vpos.shape[-1]
    VF, VS = V * F, V * S

    w1, b1, w2, b2, w3, b3 = params
    H = w1.shape[1]
    Dout = w3.shape[1]                          # V * F
    assert Dout == VF
    time_dim = t.shape[-1]

    # ---- split the first-layer weight along the concat structure of cell_features ----
    extra_t = 0 if autonomous else time_dim
    extra_s = 0 if stationary else S
    off = 0
    w1_time = w1[off:off + extra_t]; off += extra_t
    w1_cc = w1[off:off + extra_s];   off += extra_s
    w1_pos = w1[off:off + VS];       off += VS
    w1_feat = w1[off:]
    assert w1_feat.shape[0] == VF

    # batch-independent, cell-dependent inputs (never duplicated over batch in HBM)
    static_parts, w1_static = [], []
    if not stationary:
        static_parts.append(domain["cell_centers"].T)                  # (S, C)
        w1_static.append(w1_cc)
    static_parts.append(vpos.reshape(C, VS).T)                         # (VS, C)
    w1_static.append(w1_pos)
    static_T = jnp.concatenate(static_parts, axis=0)                   # (Dstat, C)
    w1s_T = jnp.concatenate(w1_static, axis=0).T                       # (H, Dstat)
    Dstat = static_T.shape[0]

    # per-batch effective first-layer bias (folds the time features if any)
    b1_eff = jnp.broadcast_to(b1.reshape(1, H), (B, H))
    if not autonomous:
        b1_eff = b1_eff + t @ w1_time                                  # (B, H)
    b1_eff = b1_eff[..., None].astype(jnp.float32)                     # (B, H, 1)

    # ---- lane tiling over cells ----
    LANE = 256                                  # MXU-pass-friendly on v6e/v7x, mult of 128 for v5e
    tile_cells = max(LANE, (tile_cells // LANE) * LANE)
    TC = min(tile_cells, pl.cdiv(C, LANE) * LANE)
    if B == 1:
        # keep >=2 grid steps so a v7x megacore doesn't idle one TensorCore
        TC = min(TC, max(LANE, pl.cdiv(C, 2 * LANE) * LANE))
    C_pad = pl.cdiv(C, TC) * TC
    num_ct = C_pad // TC

    # Lane-dense node-feature gather: feats_T[b, v*F+f, c] = u[b, T[c,v], f].
    # Built directly in (B, VF, C_pad) layout -> no transpose/pad pass over the big array.
    # TODO(synk): for very large meshes, fuse this gather into the kernel via a
    # scalar-prefetched triangulation + manual DMA instead of an XLA gather.
    flat_idx = (T.astype(jnp.int32) * F)[:, :, None] + jnp.arange(F, dtype=jnp.int32)
    flat_idx = flat_idx.reshape(C, VF).T                               # (VF, C)
    flat_idx = jnp.pad(flat_idx, ((0, 0), (0, C_pad - C)))             # pad cols -> node 0 (masked later)
    feats_T = u.reshape(B, N * F)[:, flat_idx].astype(compute_dtype)   # (B, VF, C_pad)

    static_T = jnp.pad(static_T, ((0, 0), (0, C_pad - C))).astype(compute_dtype)
    # zero-padded scale masks the pad-region outputs (they are sliced off anyway)
    scale_T = jnp.pad(ffd, ((0, 0), (0, C_pad - C))).astype(compute_dtype)   # (V, C_pad)

    # pre-transposed (tiny) weights / biases
    w1f_T = w1_feat.T.astype(compute_dtype)                            # (H, VF)
    w1s_T = w1s_T.astype(compute_dtype)                                # (H, Dstat)
    w2_T = w2.T.astype(compute_dtype)                                  # (H, H)
    w3_T = w3.T.astype(compute_dtype)                                  # (Dout, H)
    b2_T = b2.reshape(H, 1).astype(jnp.float32)
    b3_T = b3.reshape(Dout, 1).astype(jnp.float32)

    in_bytes = jnp.dtype(compute_dtype).itemsize
    out_bytes = jnp.dtype(u.dtype).itemsize
    cost = pl.CostEstimate(
        flops=int(2 * B * C_pad * H * (VF + Dstat + H + Dout)),
        transcendentals=int(2 * B * C_pad * H),
        bytes_accessed=int(B * VF * C_pad * in_bytes
                           + (Dstat + V) * C_pad * in_bytes     # fetched once per cell tile
                           + B * Dout * C_pad * out_bytes),
    )

    fixed = lambda ci, b: (0, 0)
    out = pl.pallas_call(
        _free_form_kernel,
        out_shape=jax.ShapeDtypeStruct((B, Dout, C_pad), u.dtype),
        grid_spec=pltpu.PrefetchScalarGridSpec(
            num_scalar_prefetch=0,
            # batch innermost: batch-invariant blocks (static, scale, weights) keep the
            # same block index across consecutive steps -> fetched once per cell tile.
            grid=(num_ct, B),
            in_specs=[
                pl.BlockSpec((None, VF, TC), lambda ci, b: (b, 0, ci)),   # node feats
                pl.BlockSpec((Dstat, TC), lambda ci, b: (0, ci)),         # static feats
                pl.BlockSpec((H, VF), fixed),                             # w1_feat^T
                pl.BlockSpec((H, Dstat), fixed),                          # w1_static^T
                pl.BlockSpec((None, H, 1), lambda ci, b: (b, 0, 0)),      # b1 (per batch)
                pl.BlockSpec((H, H), fixed),                              # w2^T
                pl.BlockSpec((H, 1), fixed),                              # b2
                pl.BlockSpec((Dout, H), fixed),                           # w3^T
                pl.BlockSpec((Dout, 1), fixed),                           # b3
                pl.BlockSpec((V, TC), lambda ci, b: (0, ci)),             # free-form scale (no F repeat)
            ],
            out_specs=pl.BlockSpec((None, Dout, TC), lambda ci, b: (b, 0, ci)),
        ),
        compiler_params=pltpu.CompilerParams(
            dimension_semantics=("parallel", "parallel")),
        cost_estimate=cost,
    )(feats_T, static_T, w1f_T, w1s_T, b1_eff, w2_T, b2_T, w3_T, b3_T, scale_T)

    # (B, Dout, C_pad) -> (B, C, V, F); wrapper-side transpose is layout plumbing.
    out = out[:, :, :C].reshape(B, V, F, C)
    return jnp.transpose(out, (0, 3, 1, 2))


def _reference_forward(u, t, domain, params, *, stationary=True, autonomous=True):
    """Plain-JAX reference (mirrors the PyTorch module) for correctness checking."""
    T = domain["triangulation"]
    vpos = domain["cell_local_vertex_pos"]
    ffd = domain["free_form_data"]
    B, _, F = u.shape
    C, V = T.shape
    S = vpos.shape[-1]
    feats = [jnp.broadcast_to(vpos.reshape(C, V * S)[None], (B, C, V * S)),
             u[:, T].reshape(B, C, V * F)]
    if not stationary:
        feats.insert(0, jnp.broadcast_to(domain["cell_centers"][None], (B, C, S)))
    if not autonomous:
        feats.insert(0, jnp.broadcast_to(t[:, None, :], (B, C, t.shape[-1])))
    x = jnp.concatenate(feats, axis=-1)
    w1, b1, w2, b2, w3, b3 = params
    hp = jax.lax.Precision.HIGHEST
    h = jnp.tanh(jnp.dot(x, w1, precision=hp) + b1)
    h = jnp.tanh(jnp.dot(h, w2, precision=hp) + b2)
    y = jnp.dot(h, w3, precision=hp) + b3
    coeffs = y.reshape(B, C, V, F)
    return jnp.einsum('vc,bcvf->bcvf', ffd, coeffs, precision=hp)


if __name__ == "__main__":
    key = jax.random.PRNGKey(0)

    # Small problem consistent with the module: 2-D space -> 3 vertices per cell.
    B = 2            # batch
    N_NODES = 32     # mesh nodes
    F = 4            # n_features
    S = 2            # space_dim
    V = S + 1        # n_vertices
    C = 200          # cells (not a multiple of 128/256 -> exercises padding)
    H = 32           # hidden_dim
    TIME_DIM = 1

    ks = jax.random.split(key, 8)
    u = jax.random.normal(ks[0], (B, N_NODES, F), dtype=jnp.float32)
    t = jax.random.normal(ks[1], (B, TIME_DIM), dtype=jnp.float32)

    domain = {
        "triangulation": jax.random.randint(ks[2], (C, V), 0, N_NODES, dtype=jnp.int32),
        "cell_local_vertex_pos": jax.random.normal(ks[3], (C, V, S), dtype=jnp.float32),
        "cell_centers": jax.random.normal(ks[4], (C, S), dtype=jnp.float32),
        "free_form_data": jax.random.normal(ks[5], (V, C), dtype=jnp.float32),
    }

    def make_params(k, din, h, dout):
        kk = jax.random.split(k, 6)
        init = lambda kx, shp: 0.1 * jax.random.normal(kx, shp, dtype=jnp.float32)
        # TODO(synk): if zero_init=True, zero the last layer's weight/bias here.
        return (init(kk[0], (din, h)), init(kk[1], (1, h)),
                init(kk[2], (h, h)),   init(kk[3], (1, h)),
                init(kk[4], (h, dout)), init(kk[5], (1, dout)))

    configs = [
        # (stationary, autonomous, compute_dtype, atol, rtol)
        (True,  True,  jnp.float32,  1e-5, 1e-4),   # exact-path check
        (False, False, jnp.float32,  1e-5, 1e-4),   # exercises the w1 split (time + cell_centers)
        (True,  True,  jnp.bfloat16, 5e-2, 1e-1),   # bf16 storage / MXU path
    ]

    for idx, (stat, auto, cdt, atol, rtol) in enumerate(configs):
        din = V * (S + F) + (0 if stat else S) + (0 if auto else TIME_DIM)
        params = make_params(jax.random.fold_in(ks[6], idx), din, H, V * F)

        msgs = free_form_term_forward(u, t, domain, params,
                                      stationary=stat, autonomous=auto,
                                      compute_dtype=cdt)
        msgs = jax.block_until_ready(msgs)

        ref = _reference_forward(u, t, domain, params, stationary=stat, autonomous=auto)
        assert msgs.shape == (B, C, V, F)
        max_err = float(jnp.max(jnp.abs(msgs - ref)))
        assert jnp.allclose(msgs, ref, atol=atol, rtol=rtol), (idx, max_err)

    print("KERNEL_OK")
</pallas_src>

<mosaic_0001>
module attributes {stable_mosaic.version = 11 : i64} {
  func.func @_free_form_kernel(%arg0: i32, %arg1: i32, %arg2: memref<1x12x256xf32, #tpu.memory_space<vmem>>, %arg3: memref<6x256xf32, #tpu.memory_space<vmem>>, %arg4: memref<32x12xf32, #tpu.memory_space<vmem>>, %arg5: memref<32x6xf32, #tpu.memory_space<vmem>>, %arg6: memref<1x32x1xf32, #tpu.memory_space<vmem>>, %arg7: memref<32x32xf32, #tpu.memory_space<vmem>>, %arg8: memref<32x1xf32, #tpu.memory_space<vmem>>, %arg9: memref<12x32xf32, #tpu.memory_space<vmem>>, %arg10: memref<12x1xf32, #tpu.memory_space<vmem>>, %arg11: memref<3x256xf32, #tpu.memory_space<vmem>>, %arg12: memref<1x12x256xf32, #tpu.memory_space<vmem>>) attributes {dimension_semantics = [#tpu.dimension_semantics<parallel>, #tpu.dimension_semantics<parallel>], iteration_bounds = array<i64: 1, 2>, scalar_prefetch = 0 : i64, scratch_operands = 0 : i64, tpu.core_type = #tpu.core_type<tc>, window_params = [{transform_indices = @transform_0, window_bounds = array<i64: 1, 12, 256>}, {transform_indices = @transform_1, window_bounds = array<i64: 6, 256>}, {pipeline_mode = #tpu.pipeline_mode<synchronous>, transform_indices = @transform_2, window_bounds = array<i64: 32, 12>}, {pipeline_mode = #tpu.pipeline_mode<synchronous>, transform_indices = @transform_3, window_bounds = array<i64: 32, 6>}, {transform_indices = @transform_4, window_bounds = array<i64: 1, 32, 1>}, {pipeline_mode = #tpu.pipeline_mode<synchronous>, transform_indices = @transform_5, window_bounds = array<i64: 32, 32>}, {pipeline_mode = #tpu.pipeline_mode<synchronous>, transform_indices = @transform_6, window_bounds = array<i64: 32, 1>}, {pipeline_mode = #tpu.pipeline_mode<synchronous>, transform_indices = @transform_7, window_bounds = array<i64: 12, 32>}, {pipeline_mode = #tpu.pipeline_mode<synchronous>, transform_indices = @transform_8, window_bounds = array<i64: 12, 1>}, {transform_indices = @transform_9, window_bounds = array<i64: 3, 256>}, {transform_indices = @transform_10, window_bounds = array<i64: 1, 12, 256>}]} {
    %c0 = arith.constant 0 : index
    %c0_0 = arith.constant 0 : index
    %0 = vector.load %arg4[%c0, %c0_0] : memref<32x12xf32, #tpu.memory_space<vmem>>, vector<32x12xf32>
    %c0_1 = arith.constant 0 : index
    %c0_2 = arith.constant 0 : index
    %c0_3 = arith.constant 0 : index
    %1 = vector.load %arg2[%c0_1, %c0_2, %c0_3] : memref<1x12x256xf32, #tpu.memory_space<vmem>>, vector<1x12x256xf32>
    %2 = vector.shape_cast %1 : vector<1x12x256xf32> to vector<12x256xf32>
    %cst = arith.constant dense<0.000000e+00> : vector<32x256xf32>
    %3 = tpu.matmul %0, %2, %cst {dimension_numbers = #tpu.dot_dimension_numbers<[1], [0], [0], [1], [0, 0, 1, 1], [], []>} : vector<32x12xf32>, vector<12x256xf32>, vector<32x256xf32> -> vector<32x256xf32>
    %c0_4 = arith.constant 0 : index
    %c0_5 = arith.constant 0 : index
    %4 = vector.load %arg5[%c0_4, %c0_5] : memref<32x6xf32, #tpu.memory_space<vmem>>, vector<32x6xf32>
    %c0_6 = arith.constant 0 : index
    %c0_7 = arith.constant 0 : index
    %5 = vector.load %arg3[%c0_6, %c0_7] : memref<6x256xf32, #tpu.memory_space<vmem>>, vector<6x256xf32>
    %cst_8 = arith.constant dense<0.000000e+00> : vector<32x256xf32>
    %6 = tpu.matmul %4, %5, %cst_8 {dimension_numbers = #tpu.dot_dimension_numbers<[1], [0], [0], [1], [0, 0, 1, 1], [], []>} : vector<32x6xf32>, vector<6x256xf32>, vector<32x256xf32> -> vector<32x256xf32>
    %7 = arith.addf %3, %6 : vector<32x256xf32>
    %c0_9 = arith.constant 0 : index
    %c0_10 = arith.constant 0 : index
    %c0_11 = arith.constant 0 : index
    %8 = vector.load %arg6[%c0_9, %c0_10, %c0_11] : memref<1x32x1xf32, #tpu.memory_space<vmem>>, vector<1x32x1xf32>
    %9 = vector.shape_cast %8 : vector<1x32x1xf32> to vector<32x1xf32>
    %10 = vector.broadcast %9 : vector<32x1xf32> to vector<32x256xf32>
    %11 = arith.addf %7, %10 : vector<32x256xf32>
    %12 = math.tanh %11 : vector<32x256xf32>
    %c0_12 = arith.constant 0 : index
    %c0_13 = arith.constant 0 : index
    %13 = vector.load %arg7[%c0_12, %c0_13] : memref<32x32xf32, #tpu.memory_space<vmem>>, vector<32x32xf32>
    %cst_14 = arith.constant dense<0.000000e+00> : vector<32x256xf32>
    %14 = tpu.matmul %13, %12, %cst_14 {dimension_numbers = #tpu.dot_dimension_numbers<[1], [0], [0], [1], [0, 0, 1, 1], [], []>} : vector<32x32xf32>, vector<32x256xf32>, vector<32x256xf32> -> vector<32x256xf32>
    %c0_15 = arith.constant 0 : index
    %c0_16 = arith.constant 0 : index
    %15 = vector.load %arg8[%c0_15, %c0_16] : memref<32x1xf32, #tpu.memory_space<vmem>>, vector<32x1xf32>
    %16 = vector.broadcast %15 : vector<32x1xf32> to vector<32x256xf32>
    %17 = arith.addf %14, %16 : vector<32x256xf32>
    %18 = math.tanh %17 : vector<32x256xf32>
    %c0_17 = arith.constant 0 : index
    %c0_18 = arith.constant 0 : index
    %19 = vector.load %arg9[%c0_17, %c0_18] : memref<12x32xf32, #tpu.memory_space<vmem>>, vector<12x32xf32>
    %cst_19 = arith.constant dense<0.000000e+00> : vector<12x256xf32>
    %20 = tpu.matmul %19, %18, %cst_19 {dimension_numbers = #tpu.dot_dimension_numbers<[1], [0], [0], [1], [0, 0, 1, 1], [], []>} : vector<12x32xf32>, vector<32x256xf32>, vector<12x256xf32> -> vector<12x256xf32>
    %c0_20 = arith.constant 0 : index
    %c0_21 = arith.constant 0 : index
    %21 = vector.load %arg10[%c0_20, %c0_21] : memref<12x1xf32, #tpu.memory_space<vmem>>, vector<12x1xf32>
    %22 = vector.broadcast %21 : vector<12x1xf32> to vector<12x256xf32>
    %23 = arith.addf %20, %22 : vector<12x256xf32>
    %c0_22 = arith.constant 0 : index
    %c0_23 = arith.constant 0 : index
    %24 = vector.load %arg11[%c0_22, %c0_23] : memref<3x256xf32, #tpu.memory_space<vmem>>, vector<3x256xf32>
    %25 = vector.extract_strided_slice %24 {offsets = [0, 0], sizes = [1, 256], strides = [1, 1]} : vector<3x256xf32> to vector<1x256xf32>
    %26 = vector.shape_cast %25 : vector<1x256xf32> to vector<1x256xf32>
    %27 = vector.broadcast %26 : vector<1x256xf32> to vector<4x256xf32>
    %28 = vector.extract_strided_slice %24 {offsets = [1, 0], sizes = [1, 256], strides = [1, 1]} : vector<3x256xf32> to vector<1x256xf32>
    %29 = vector.shape_cast %28 : vector<1x256xf32> to vector<1x256xf32>
    %30 = vector.broadcast %29 : vector<1x256xf32> to vector<4x256xf32>
    %31 = vector.extract_strided_slice %24 {offsets = [2, 0], sizes = [1, 256], strides = [1, 1]} : vector<3x256xf32> to vector<1x256xf32>
    %32 = vector.shape_cast %31 : vector<1x256xf32> to vector<1x256xf32>
    %33 = vector.broadcast %32 : vector<1x256xf32> to vector<4x256xf32>
    %34 = tpu.concatenate %27, %30, %33 in 0 : vector<4x256xf32>, vector<4x256xf32>, vector<4x256xf32> -> vector<12x256xf32>
    %35 = arith.mulf %23, %34 : vector<12x256xf32>
    %c0_24 = arith.constant 0 : index
    %c0_25 = arith.constant 0 : index
    %c0_26 = arith.constant 0 : index
    %36 = vector.load %arg12[%c0_24, %c0_25, %c0_26] : memref<1x12x256xf32, #tpu.memory_space<vmem>>, vector<1x12x256xf32>
    %37 = vector.shape_cast %36 : vector<1x12x256xf32> to vector<12x256xf32>
    %38 = vector.shape_cast %35 : vector<12x256xf32> to vector<1x12x256xf32>
    tpu.vector_store %arg12[%c0_24, %c0_25, %c0_26], %38 {strides = array<i32>} : memref<1x12x256xf32, #tpu.memory_space<vmem>>, vector<1x12x256xf32>,
    return
  }
  func.func @transform_0(%arg0: i32, %arg1: i32) -> (i32, i32, i32) {
    %c0_i32 = arith.constant 0 : i32
    %c0_i32_0 = arith.constant 0 : i32
    return %arg1, %c0_i32, %arg0 : i32, i32, i32
  }
  func.func @transform_1(%arg0: i32, %arg1: i32) -> (i32, i32) {
    %c0_i32 = arith.constant 0 : i32
    %c0_i32_0 = arith.constant 0 : i32
    return %c0_i32, %arg0 : i32, i32
  }
  func.func @transform_2(%arg0: i32, %arg1: i32) -> (i32, i32) {
    %c0_i32 = arith.constant 0 : i32
    %c0_i32_0 = arith.constant 0 : i32
    %c0_i32_1 = arith.constant 0 : i32
    return %c0_i32, %c0_i32_0 : i32, i32
  }
  func.func @transform_3(%arg0: i32, %arg1: i32) -> (i32, i32) {
    %c0_i32 = arith.constant 0 : i32
    %c0_i32_0 = arith.constant 0 : i32
    %c0_i32_1 = arith.constant 0 : i32
    return %c0_i32, %c0_i32_0 : i32, i32
  }
  func.func @transform_4(%arg0: i32, %arg1: i32) -> (i32, i32, i32) {
    %c0_i32 = arith.constant 0 : i32
    %c0_i32_0 = arith.constant 0 : i32
    %c0_i32_1 = arith.constant 0 : i32
    return %arg1, %c0_i32, %c0_i32_0 : i32, i32, i32
  }
  func.func @transform_5(%arg0: i32, %arg1: i32) -> (i32, i32) {
    %c0_i32 = arith.constant 0 : i32
    %c0_i32_0 = arith.constant 0 : i32
    %c0_i32_1 = arith.constant 0 : i32
    return %c0_i32, %c0_i32_0 : i32, i32
  }
  func.func @transform_6(%arg0: i32, %arg1: i32) -> (i32, i32) {
    %c0_i32 = arith.constant 0 : i32
    %c0_i32_0 = arith.constant 0 : i32
    %c0_i32_1 = arith.constant 0 : i32
    return %c0_i32, %c0_i32_0 : i32, i32
  }
  func.func @transform_7(%arg0: i32, %arg1: i32) -> (i32, i32) {
    %c0_i32 = arith.constant 0 : i32
    %c0_i32_0 = arith.constant 0 : i32
    %c0_i32_1 = arith.constant 0 : i32
    return %c0_i32, %c0_i32_0 : i32, i32
  }
  func.func @transform_8(%arg0: i32, %arg1: i32) -> (i32, i32) {
    %c0_i32 = arith.constant 0 : i32
    %c0_i32_0 = arith.constant 0 : i32
    %c0_i32_1 = arith.constant 0 : i32
    return %c0_i32, %c0_i32_0 : i32, i32
  }
  func.func @transform_9(%arg0: i32, %arg1: i32) -> (i32, i32) {
    %c0_i32 = arith.constant 0 : i32
    %c0_i32_0 = arith.constant 0 : i32
    return %c0_i32, %arg0 : i32, i32
  }
  func.func @transform_10(%arg0: i32, %arg1: i32) -> (i32, i32, i32) {
    %c0_i32 = arith.constant 0 : i32
    %c0_i32_0 = arith.constant 0 : i32
    return %arg1, %c0_i32, %arg0 : i32, i32, i32
  }
}

</mosaic_0001>

<llo_original>
// kernel: tpu_custom_call.1
$region0: #{tpu_custom_call.1}
  #allocation0 [shape = 'u32[]', space=smem, size = 0x4, offset = 0x4, fixed_abs, tag = 'smem constant byte address 0x4 - core index']
  #allocation1 [shape = 'u32[144,128]{1,0:T(1,128)}', space=vmem, size = 0x12000, scoped, tag = 'internal scratch']
  %s0 = inlined_call_operand.vmem [shape: f32[2,12,256], index: 0, kind: input, shape index: {}]
  %s1 = inlined_call_operand.vmem [shape: f32[6,256], index: 1, kind: input, shape index: {}]
  %s2 = inlined_call_operand.vmem [shape: f32[32,12], index: 2, kind: input, shape index: {}]
  %s3 = inlined_call_operand.vmem [shape: f32[32,6], index: 3, kind: input, shape index: {}]
  %s4 = inlined_call_operand.vmem [shape: f32[2,32,1], index: 4, kind: input, shape index: {}]
  %s5 = inlined_call_operand.vmem [shape: f32[32,32], index: 5, kind: input, shape index: {}]
  %s6 = inlined_call_operand.vmem [shape: f32[32,1], index: 6, kind: input, shape index: {}]
  %s7 = inlined_call_operand.vmem [shape: f32[12,32], index: 7, kind: input, shape index: {}]
  %s8 = inlined_call_operand.vmem [shape: f32[12,1], index: 8, kind: input, shape index: {}]
  %s9 = inlined_call_operand.vmem [shape: f32[3,256], index: 9, kind: input, shape index: {}]
  %s10 = inlined_call_operand.vmem [shape: f32[2,12,256], index: 10, kind: output, shape index: {}]
  %s11 = sld [smem:[#allocation0]]
  $region73: #{tpu_custom_call.1} parent=0
    _
  %s13 = ssub.s32 1, %s11
  %s14 = scalar_select 0, %s13, %s11
  loop: start=0, step=1, limit=4
  $region2: #{tpu_custom_call.1} parent=0 // loop_pre_header
    _
  $region3: #{tpu_custom_call.1} parent=0 // loop_header
    %s16 = sphi 0, %s20
    %p17 = scmp.ge.s32.totalorder %s16, 4
    %s23 = sphi 0, %s35
    %s24 = sphi 0, %s31
    %s25 = sphi 0, %s23
    %s26 = sphi 0, %s24
    %s27 = sphi 0, %s25
    %s28 = sphi 0, %s26
    %s40 = sphi 0, %s42
    %s43 = sphi 0, %s40
    %s44 = sphi 0, %s43
    %s60 = sphi 0, %s44
    %s66 = sphi 0, %s68
    %s69 = sphi 0, %s66
    %s70 = sphi 0, %s69
    %s86 = sphi 0, %s70
    %s90 = sphi 0, %s90
    %s92 = sphi 0, %s90
    %s93 = sphi 0, %s92
    %s107 = sphi 0, %s93
    %s111 = sphi 0, %s111
    %s113 = sphi 0, %s111
    %s114 = sphi 0, %s113
    %s128 = sphi 0, %s114
    %s134 = sphi 0, %s136
    %s137 = sphi 0, %s134
    %s138 = sphi 0, %s137
    %s154 = sphi 0, %s138
    %s158 = sphi 0, %s158
    %s160 = sphi 0, %s158
    %s161 = sphi 0, %s160
    %s175 = sphi 0, %s161
    %s179 = sphi 0, %s179
    %s181 = sphi 0, %s179
    %s182 = sphi 0, %s181
    %s196 = sphi 0, %s182
    %s200 = sphi 0, %s200
    %s202 = sphi 0, %s200
    %s203 = sphi 0, %s202
    %s217 = sphi 0, %s203
    %s221 = sphi 0, %s221
    %s223 = sphi 0, %s221
    %s224 = sphi 0, %s223
    %s238 = sphi 0, %s224
    %s244 = sphi 0, %s246
    %s247 = sphi 0, %s244
    %s248 = sphi 0, %s247
    %s264 = sphi 0, %s248
    %s272 = sphi 0, %s274
    %s275 = sphi 0, %s272
    %s276 = sphi 0, %s275
    %s292 = sphi 0, %s276
  $region4: #{tpu_custom_call.1} parent=0 // loop_header_branch
    %19 = sbr.rel (%p17) target = $region8
  $region5: #{tpu_custom_call.1} parent=0 // loop_body
    %s21 = ssub.s32 %s16, 1
    %s22 = ssub.s32 %s16, 2
    %s29 = sadd.s32 1, %s24
    %p30 = scmp.ge.s32.totalorder %s29, 2
    %s31 = scalar_select %p30, 0, %s29
    %s32 = sadd.s32 1, %s23
    %s33 = scalar_select %p30, %s32, %s23
    %p34 = scmp.ge.s32.totalorder %s33, 1
    %s35 = scalar_select %p34, 0, %s33
    %s36 = ssub.s32 %s24, %s31
    %s37 = ssub.s32 %s23, %s35
    %s38 = sor.u32 %s36, %s37
    %p39 = scmp.eq.s32.totalorder %s38, 0
    %s41 = sadd.s32 %s40, 1
    %s42 = scalar_select %p39, %s40, %s41
    %p45 = pneg %p39
    %p46 = scmp.eq.s32.totalorder %s16, 1
    %p47 = por %p45, %p46
    %p48 = scmp.ne.s32.totalorder %s40, %s43
    %p49 = scmp.eq.s32.totalorder %s16, 0
    %p50 = por %p48, %p49
    %p51 = scmp.ne.s32.totalorder %s40, %s43
    %p52 = scmp.eq.s32.totalorder %s21, 1
    %p53 = por %p51, %p52
    %p54 = scmp.ne.s32.totalorder %s43, %s44
    %p55 = scmp.eq.s32.totalorder %s21, 0
    %p56 = por %p54, %p55
    %p57 = scmp.ne.s32.totalorder %s43, %s44
    %p58 = scmp.eq.s32.totalorder %s22, 1
    %p59 = por %p57, %p58
    %p61 = scmp.ne.s32.totalorder %s44, %s60
    %p62 = scmp.eq.s32.totalorder %s22, 0
    %p63 = por %p61, %p62
    %s64 = ssub.s32 %s23, %s35
    %p65 = scmp.eq.s32.totalorder %s64, 0
    %s67 = sadd.s32 %s66, 1
    %s68 = scalar_select %p65, %s66, %s67
    %p71 = pneg %p65
    %p72 = scmp.eq.s32.totalorder %s16, 1
    %p73 = por %p71, %p72
    %p74 = scmp.ne.s32.totalorder %s66, %s69
    %p75 = scmp.eq.s32.totalorder %s16, 0
    %p76 = por %p74, %p75
    %p77 = scmp.ne.s32.totalorder %s66, %s69
    %p78 = scmp.eq.s32.totalorder %s21, 1
    %p79 = por %p77, %p78
    %p80 = scmp.ne.s32.totalorder %s69, %s70
    %p81 = scmp.eq.s32.totalorder %s21, 0
    %p82 = por %p80, %p81
    %p83 = scmp.ne.s32.totalorder %s69, %s70
    %p84 = scmp.eq.s32.totalorder %s22, 1
    %p85 = por %p83, %p84
    %p87 = scmp.ne.s32.totalorder %s70, %s86
    %p88 = scmp.eq.s32.totalorder %s22, 0
    %p89 = por %p87, %p88
    %s91 = sadd.s32 %s90, 1
    %p94 = scmp.eq.s32.totalorder %s16, 1
    %p95 = scmp.ne.s32.totalorder %s90, %s92
    %p96 = scmp.eq.s32.totalorder %s16, 0
    %p97 = por %p95, %p96
    %p98 = scmp.ne.s32.totalorder %s90, %s92
    %p99 = scmp.eq.s32.totalorder %s21, 1
    %p100 = por %p98, %p99
    %p101 = scmp.ne.s32.totalorder %s92, %s93
    %p102 = scmp.eq.s32.totalorder %s21, 0
    %p103 = por %p101, %p102
    %p104 = scmp.ne.s32.totalorder %s92, %s93
    %p105 = scmp.eq.s32.totalorder %s22, 1
    %p106 = por %p104, %p105
    %p108 = scmp.ne.s32.totalorder %s93, %s107
    %p109 = scmp.eq.s32.totalorder %s22, 0
    %p110 = por %p108, %p109
    %s112 = sadd.s32 %s111, 1
    %p115 = scmp.eq.s32.totalorder %s16, 1
    %p116 = scmp.ne.s32.totalorder %s111, %s113
    %p117 = scmp.eq.s32.totalorder %s16, 0
    %p118 = por %p116, %p117
    %p119 = scmp.ne.s32.totalorder %s111, %s113
    %p120 = scmp.eq.s32.totalorder %s21, 1
    %p121 = por %p119, %p120
    %p122 = scmp.ne.s32.totalorder %s113, %s114
    %p123 = scmp.eq.s32.totalorder %s21, 0
    %p124 = por %p122, %p123
    %p125 = scmp.ne.s32.totalorder %s113, %s114
    %p126 = scmp.eq.s32.totalorder %s22, 1
    %p127 = por %p125, %p126
    %p129 = scmp.ne.s32.totalorder %s114, %s128
    %p130 = scmp.eq.s32.totalorder %s22, 0
    %p131 = por %p129, %p130
    %s132 = ssub.s32 %s24, %s31
    %p133 = scmp.eq.s32.totalorder %s132, 0
    %s135 = sadd.s32 %s134, 1
    %s136 = scalar_select %p133, %s134, %s135
    %p139 = pneg %p133
    %p140 = scmp.eq.s32.totalorder %s16, 1
    %p141 = por %p139, %p140
    %p142 = scmp.ne.s32.totalorder %s134, %s137
    %p143 = scmp.eq.s32.totalorder %s16, 0
    %p144 = por %p142, %p143
    %p145 = scmp.ne.s32.totalorder %s134, %s137
    %p146 = scmp.eq.s32.totalorder %s21, 1
    %p147 = por %p145, %p146
    %p148 = scmp.ne.s32.totalorder %s137, %s138
    %p149 = scmp.eq.s32.totalorder %s21, 0
    %p150 = por %p148, %p149
    %p151 = scmp.ne.s32.totalorder %s137, %s138
    %p152 = scmp.eq.s32.totalorder %s22, 1
    %p153 = por %p151, %p152
    %p155 = scmp.ne.s32.totalorder %s138, %s154
    %p156 = scmp.eq.s32.totalorder %s22, 0
    %p157 = por %p155, %p156
    %s159 = sadd.s32 %s158, 1
    %p162 = scmp.eq.s32.totalorder %s16, 1
    %p163 = scmp.ne.s32.totalorder %s158, %s160
    %p164 = scmp.eq.s32.totalorder %s16, 0
    %p165 = por %p163, %p164
    %p166 = scmp.ne.s32.totalorder %s158, %s160
    %p167 = scmp.eq.s32.totalorder %s21, 1
    %p168 = por %p166, %p167
    %p169 = scmp.ne.s32.totalorder %s160, %s161
    %p170 = scmp.eq.s32.totalorder %s21, 0
    %p171 = por %p169, %p170
    %p172 = scmp.ne.s32.totalorder %s160, %s161
    %p173 = scmp.eq.s32.totalorder %s22, 1
    %p174 = por %p172, %p173
    %p176 = scmp.ne.s32.totalorder %s161, %s175
    %p177 = scmp.eq.s32.totalorder %s22, 0
    %p178 = por %p176, %p177
    %s180 = sadd.s32 %s179, 1
    %p183 = scmp.eq.s32.totalorder %s16, 1
    %p184 = scmp.ne.s32.totalorder %s179, %s181
    %p185 = scmp.eq.s32.totalorder %s16, 0
    %p186 = por %p184, %p185
    %p187 = scmp.ne.s32.totalorder %s179, %s181
    %p188 = scmp.eq.s32.totalorder %s21, 1
    %p189 = por %p187, %p188
    %p190 = scmp.ne.s32.totalorder %s181, %s182
    %p191 = scmp.eq.s32.totalorder %s21, 0
    %p192 = por %p190, %p191
    %p193 = scmp.ne.s32.totalorder %s181, %s182
    %p194 = scmp.eq.s32.totalorder %s22, 1
    %p195 = por %p193, %p194
    %p197 = scmp.ne.s32.totalorder %s182, %s196
    %p198 = scmp.eq.s32.totalorder %s22, 0
    %p199 = por %p197, %p198
    %s201 = sadd.s32 %s200, 1
    %p204 = scmp.eq.s32.totalorder %s16, 1
    %p205 = scmp.ne.s32.totalorder %s200, %s202
    %p206 = scmp.eq.s32.totalorder %s16, 0
    %p207 = por %p205, %p206
    %p208 = scmp.ne.s32.totalorder %s200, %s202
    %p209 = scmp.eq.s32.totalorder %s21, 1
    %p210 = por %p208, %p209
    %p211 = scmp.ne.s32.totalorder %s202, %s203
    %p212 = scmp.eq.s32.totalorder %s21, 0
    %p213 = por %p211, %p212
    %p214 = scmp.ne.s32.totalorder %s202, %s203
    %p215 = scmp.eq.s32.totalorder %s22, 1
    %p216 = por %p214, %p215
    %p218 = scmp.ne.s32.totalorder %s203, %s217
    %p219 = scmp.eq.s32.totalorder %s22, 0
    %p220 = por %p218, %p219
    %s222 = sadd.s32 %s221, 1
    %p225 = scmp.eq.s32.totalorder %s16, 1
    %p226 = scmp.ne.s32.totalorder %s221, %s223
    %p227 = scmp.eq.s32.totalorder %s16, 0
    %p228 = por %p226, %p227
    %p229 = scmp.ne.s32.totalorder %s221, %s223
    %p230 = scmp.eq.s32.totalorder %s21, 1
    %p231 = por %p229, %p230
    %p232 = scmp.ne.s32.totalorder %s223, %s224
    %p233 = scmp.eq.s32.totalorder %s21, 0
    %p234 = por %p232, %p233
    %p235 = scmp.ne.s32.totalorder %s223, %s224
    %p236 = scmp.eq.s32.totalorder %s22, 1
    %p237 = por %p235, %p236
    %p239 = scmp.ne.s32.totalorder %s224, %s238
    %p240 = scmp.eq.s32.totalorder %s22, 0
    %p241 = por %p239, %p240
    %s242 = ssub.s32 %s23, %s35
    %p243 = scmp.eq.s32.totalorder %s242, 0
    %s245 = sadd.s32 %s244, 1
    %s246 = scalar_select %p243, %s244, %s245
    %p249 = pneg %p243
    %p250 = scmp.eq.s32.totalorder %s16, 1
    %p251 = por %p249, %p250
    %p252 = scmp.ne.s32.totalorder %s244, %s247
    %p253 = scmp.eq.s32.totalorder %s16, 0
    %p254 = por %p252, %p253
    %p255 = scmp.ne.s32.totalorder %s244, %s247
    %p256 = scmp.eq.s32.totalorder %s21, 1
    %p257 = por %p255, %p256
    %p258 = scmp.ne.s32.totalorder %s247, %s248
    %p259 = scmp.eq.s32.totalorder %s21, 0
    %p260 = por %p258, %p259
    %p261 = scmp.ne.s32.totalorder %s247, %s248
    %p262 = scmp.eq.s32.totalorder %s22, 1
    %p263 = por %p261, %p262
    %p265 = scmp.ne.s32.totalorder %s248, %s264
    %p266 = scmp.eq.s32.totalorder %s22, 0
    %p267 = por %p265, %p266
    %s268 = ssub.s32 %s24, %s31
    %s269 = ssub.s32 %s23, %s35
    %s270 = sor.u32 %s268, %s269
    %p271 = scmp.eq.s32.totalorder %s270, 0
    %s273 = sadd.s32 %s272, 1
    %s274 = scalar_select %p271, %s272, %s273
    %p277 = pneg %p271
    %p278 = scmp.eq.s32.totalorder %s16, 1
    %p279 = por %p277, %p278
    %p280 = scmp.ne.s32.totalorder %s272, %s275
    %p281 = scmp.eq.s32.totalorder %s16, 0
    %p282 = por %p280, %p281
    %p283 = scmp.ne.s32.totalorder %s272, %s275
    %p284 = scmp.eq.s32.totalorder %s21, 1
    %p285 = por %p283, %p284
    %p286 = scmp.ne.s32.totalorder %s275, %s276
    %p287 = scmp.eq.s32.totalorder %s21, 0
    %p288 = por %p286, %p287
    %p289 = scmp.ne.s32.totalorder %s275, %s276
    %p290 = scmp.eq.s32.totalorder %s22, 1
    %p291 = por %p289, %p290
    %p293 = scmp.ne.s32.totalorder %s276, %s292
    %p294 = scmp.eq.s32.totalorder %s22, 0
    %p295 = por %p293, %p294
    %p296 = scmp.le.s32.totalorder 1, %s16
    %p297 = scmp.lt.s32.totalorder %s16, 3
    %p298 = pnand %p296, %p297
    %p299 = pneg %p298
    // Predicated region
    $region9: #{tpu_custom_call.1} parent=5 // pred_check
      _
    $region10: #{tpu_custom_call.1} parent=5 // pred_check_branch
      %301 = sbr.rel (%p298) target = $region12
    $region11: #{tpu_custom_call.1} parent=5 // pred_region
      %s302 = ssub.s32 %s16, 1
      // Predicated region
      $region13: #{tpu_custom_call.1} parent=11 // pred_check
        %p303 = pneg %p82
      $region14: #{tpu_custom_call.1} parent=11 // pred_check_branch
        %305 = sbr.rel (%p303) target = $region16
      $region15: #{tpu_custom_call.1} parent=11 // pred_region
        %s306 = smul.u32 2, %s25
        %p307 = scmp.lt.s32.totalorder %s306, 1
        %s308 = scalar_select %p307, %s306, 1
        %s309 = smul.addr %s308, 8
        %s310 = scalar_lea.vmem %s1, %s309
        %s311 = smul.u32 2, %s25
      $region16: #{tpu_custom_call.1} parent=11 // pred_fallthru
        _
      // Predicated region
      $region17: #{tpu_custom_call.1} parent=11 // pred_check
        %p312 = pneg %p103
      $region18: #{tpu_custom_call.1} parent=11 // pred_check_branch
        %314 = sbr.rel (%p312) target = $region20
      $region19: #{tpu_custom_call.1} parent=11 // pred_region
        _
      $region20: #{tpu_custom_call.1} parent=11 // pred_fallthru
        _
      // Predicated region
      $region21: #{tpu_custom_call.1} parent=11 // pred_check
        %p315 = pneg %p124
      $region22: #{tpu_custom_call.1} parent=11 // pred_check_branch
        %317 = sbr.rel (%p315) target = $region24
      $region23: #{tpu_custom_call.1} parent=11 // pred_region
        _
      $region24: #{tpu_custom_call.1} parent=11 // pred_fallthru
        _
      // Predicated region
      $region25: #{tpu_custom_call.1} parent=11 // pred_check
        %p318 = pneg %p171
      $region26: #{tpu_custom_call.1} parent=11 // pred_check_branch
        %320 = sbr.rel (%p318) target = $region28
      $region27: #{tpu_custom_call.1} parent=11 // pred_region
        _
      $region28: #{tpu_custom_call.1} parent=11 // pred_fallthru
        _
      // Predicated region
      $region29: #{tpu_custom_call.1} parent=11 // pred_check
        %p321 = pneg %p192
      $region30: #{tpu_custom_call.1} parent=11 // pred_check_branch
        %323 = sbr.rel (%p321) target = $region32
      $region31: #{tpu_custom_call.1} parent=11 // pred_region
        _
      $region32: #{tpu_custom_call.1} parent=11 // pred_fallthru
        _
      // Predicated region
      $region33: #{tpu_custom_call.1} parent=11 // pred_check
        %p324 = pneg %p213
      $region34: #{tpu_custom_call.1} parent=11 // pred_check_branch
        %326 = sbr.rel (%p324) target = $region36
      $region35: #{tpu_custom_call.1} parent=11 // pred_region
        _
      $region36: #{tpu_custom_call.1} parent=11 // pred_fallthru
        _
      // Predicated region
      $region37: #{tpu_custom_call.1} parent=11 // pred_check
        %p327 = pneg %p234
      $region38: #{tpu_custom_call.1} parent=11 // pred_check_branch
        %329 = sbr.rel (%p327) target = $region40
      $region39: #{tpu_custom_call.1} parent=11 // pred_region
        _
      $region40: #{tpu_custom_call.1} parent=11 // pred_fallthru
        _
      // Predicated region
      $region41: #{tpu_custom_call.1} parent=11 // pred_check
        %p330 = pneg %p260
      $region42: #{tpu_custom_call.1} parent=11 // pred_check_branch
        %332 = sbr.rel (%p330) target = $region44
      $region43: #{tpu_custom_call.1} parent=11 // pred_region
        %s333 = smul.u32 2, %s25
        %p334 = scmp.lt.s32.totalorder %s333, 1
        %s335 = scalar_select %p334, %s333, 1
        %s336 = smul.addr %s335, 4
        %s337 = scalar_lea.vmem %s9, %s336
        %s338 = smul.u32 2, %s25
      $region44: #{tpu_custom_call.1} parent=11 // pred_fallthru
        _
    $region12: #{tpu_custom_call.1} parent=5 // pred_fallthru
      _
    %p339 = scmp.lt.s32.totalorder %s16, 2
    // Predicated region
    $region45: #{tpu_custom_call.1} parent=5 // pred_check
      %p340 = pneg %p339
    $region46: #{tpu_custom_call.1} parent=5 // pred_check_branch
      %342 = sbr.rel (%p340) target = $region48
    $region47: #{tpu_custom_call.1} parent=5 // pred_region
      // Predicated region
      $region49: #{tpu_custom_call.1} parent=47 // pred_check
        %p343 = pneg %p50
      $region50: #{tpu_custom_call.1} parent=47 // pred_check_branch
        %345 = sbr.rel (%p343) target = $region52
      $region51: #{tpu_custom_call.1} parent=47 // pred_region
        %s346 = smul.u32 2, %s23
        %p347 = scmp.lt.s32.totalorder %s24, 1
        %s348 = scalar_select %p347, %s24, 1
        %p349 = scmp.lt.s32.totalorder %s346, 1
        %s350 = scalar_select %p349, %s346, 1
        %s351 = smul.addr %s348, 4
        %s352 = sadd.s32 %s350, %s351
        %s353 = smul.addr %s352, 8
        %s354 = scalar_lea.vmem %s0, %s353
        %s355 = smul.u32 2, %s23
      $region52: #{tpu_custom_call.1} parent=47 // pred_fallthru
        _
      // Predicated region
      $region53: #{tpu_custom_call.1} parent=47 // pred_check
        %p356 = pneg %p144
      $region54: #{tpu_custom_call.1} parent=47 // pred_check_branch
        %358 = sbr.rel (%p356) target = $region56
      $region55: #{tpu_custom_call.1} parent=47 // pred_region
        %p359 = scmp.lt.s32.totalorder %s24, 1
        %s360 = scalar_select %p359, %s24, 1
        %s361 = smul.addr %s360, 4
        %s362 = smul.addr %s361, 8
        %s363 = scalar_lea.vmem %s4, %s362
      $region56: #{tpu_custom_call.1} parent=47 // pred_fallthru
        _
    $region48: #{tpu_custom_call.1} parent=5 // pred_fallthru
      _
    %p364 = scmp.le.s32.totalorder 1, %s16
    %p365 = scmp.lt.s32.totalorder %s16, 3
    %p366 = pnand %p364, %p365
    %p367 = pneg %p366
    // Predicated region
    $region57: #{tpu_custom_call.1} parent=5 // pred_check
      _
    $region58: #{tpu_custom_call.1} parent=5 // pred_check_branch
      %369 = sbr.rel (%p366) target = $region60
    $region59: #{tpu_custom_call.1} parent=5 // pred_region
      %s370 = ssub.s32 %s16, 1
      %s371 = smul.u32 2, %s25
      %p372 = scmp.lt.s32.totalorder %s26, 1
      %s373 = scalar_select %p372, %s26, 1
      %p374 = scmp.lt.s32.totalorder %s371, 1
      %s375 = scalar_select %p374, %s371, 1
      %s376 = smul.addr %s373, 4
      %s377 = sadd.s32 %s375, %s376
      %s378 = smul.addr %s377, 8
      %s379 = scalar_lea.vmem %s0, %s378
      %p380 = pneg %p56
      %p381 = pneg %p53
      %s382 = smul.u32 2, %s25
      %p383 = scmp.lt.s32.totalorder %s382, 1
      %s384 = scalar_select %p383, %s382, 1
      %s385 = smul.addr %s384, 8
      %s386 = scalar_lea.vmem %s1, %s385
      %p387 = pneg %p82
      %p388 = pneg %p79
      %p389 = pneg %p103
      %p390 = pneg %p100
      %p391 = pneg %p124
      %p392 = pneg %p121
      %p393 = scmp.lt.s32.totalorder %s26, 1
      %s394 = scalar_select %p393, %s26, 1
      %s395 = smul.addr %s394, 4
      %s396 = smul.addr %s395, 8
      %s397 = scalar_lea.vmem %s4, %s396
      %p398 = pneg %p150
      %p399 = pneg %p147
      %p400 = pneg %p171
      %p401 = pneg %p168
      %p402 = pneg %p192
      %p403 = pneg %p189
      %p404 = pneg %p213
      %p405 = pneg %p210
      %p406 = pneg %p234
      %p407 = pneg %p231
      %s408 = smul.u32 2, %s25
      %p409 = scmp.lt.s32.totalorder %s408, 1
      %s410 = scalar_select %p409, %s408, 1
      %s411 = smul.addr %s410, 4
      %s412 = scalar_lea.vmem %s9, %s411
      %p413 = pneg %p260
      %p414 = pneg %p257
      %p415 = pneg %p288
      %p416 = pneg %p285
      %s417 = smul.u32 2, %s25
      %p418 = scmp.lt.s32.totalorder %s26, 1
      %s419 = scalar_select %p418, %s26, 1
      %p420 = scmp.lt.s32.totalorder %s417, 1
      %s421 = scalar_select %p420, %s417, 1
      %s422 = smul.addr %s419, 4
      %s423 = sadd.s32 %s421, %s422
      %s424 = smul.addr %s423, 8
      %s425 = scalar_lea.vmem %s10, %s424
      %s426 = smul.u32 2, %s25
      %p427 = scmp.lt.s32.totalorder %s26, 1
      %s428 = scalar_select %p427, %s26, 1
      %p429 = scmp.lt.s32.totalorder %s426, 1
      %s430 = scalar_select %p429, %s426, 1
      %s431 = smul.addr %s428, 4
      %s432 = sadd.s32 %s430, %s431
      %s433 = smul.addr %s432, 8
      %s434 = scalar_lea.vmem %s0, %s433
      %s435 = smul.u32 2, %s25
      %s436 = smul.u32 2, %s25
      %p437 = scmp.lt.s32.totalorder %s436, 1
      %s438 = scalar_select %p437, %s436, 1
      %s439 = smul.addr %s438, 8
      %s440 = scalar_lea.vmem %s1, %s439
      %s441 = smul.u32 2, %s25
      %p442 = scmp.lt.s32.totalorder %s26, 1
      %s443 = scalar_select %p442, %s26, 1
      %s444 = smul.addr %s443, 4
      %s445 = smul.addr %s444, 8
      %s446 = scalar_lea.vmem %s4, %s445
      %s447 = smul.u32 2, %s25
      %p448 = scmp.lt.s32.totalorder %s447, 1
      %s449 = scalar_select %p448, %s447, 1
      %s450 = smul.addr %s449, 4
      %s451 = scalar_lea.vmem %s9, %s450
      %s452 = smul.u32 2, %s25
      %s453 = smul.u32 2, %s25
      %p454 = scmp.lt.s32.totalorder %s26, 1
      %s455 = scalar_select %p454, %s26, 1
      %p456 = scmp.lt.s32.totalorder %s453, 1
      %s457 = scalar_select %p456, %s453, 1
      %s458 = smul.addr %s455, 4
      %s459 = sadd.s32 %s457, %s458
      %s460 = smul.addr %s459, 8
      %s461 = scalar_lea.vmem %s10, %s460
      %s462 = smul.u32 2, %s25
      %v463 = vld [vmem:[%s2] sm:$0xff]
      %v464 = vld [vmem:[%s2 + $0x8] sm:$0xff]
      %v465 = vld [vmem:[%s2 + $0x10] sm:$0xff]
      %v466 = vld [vmem:[%s2 + $0x18] sm:$0xff]
      %v467 = vld [vmem:[%s434] sm:$0xff]
      %v468 = vld [vmem:[%s434 + $0x8] sm:$0xff]
      %v469 = vld [vmem:[%s434 + $0x10] sm:$0xf]
      %v470 = vld [vmem:[%s434 + $0x18] sm:$0xf]
      %v471 = vld [vmem:[%s3] sm:$0xff]
      %v472 = vld [vmem:[%s3 + $0x8] sm:$0xff]
      %v473 = vld [vmem:[%s3 + $0x10] sm:$0xff]
      %v474 = vld [vmem:[%s3 + $0x18] sm:$0xff]
      %v475 = vld [vmem:[%s440] sm:$0x3f]
      %v476 = vld [vmem:[%s440 + $0x8] sm:$0x3f]
      %vm477 = vcmask 48128
      %v479 = vsel %vm477, %v471, 0
      %v482 = vsel %vm477, %v472, 0
      %v485 = vsel %vm477, %v473, 0
      %v488 = vsel %vm477, %v474, 0
      %vm490 = vcmask 1045504
      %v492 = vsel %vm490, %v475, 0
      %v495 = vsel %vm490, %v476, 0
      %497 = vmatprep.subr.mxu0 %v495
      %498 = vmatpush1.msra.mxu0 %v492
      %499 = vmatprep.subr.mxu0 0.0
      %500 = vmatpush1.msra.mxu0 0.0
      %501 = vmatprep.subr.mxu0 0.0
      %502 = vmatpush1.msra.mxu0 0.0
      %503 = vmatprep.subr.mxu0 0.0
      %504 = vmatpush1.msra.mxu0 0.0
      %505 = vmatprep.subr.mxu0 0.0
      %506 = vmatpush1.msra.mxu0 0.0
      %507 = vmatprep.subr.mxu0 0.0
      %508 = vmatpush1.msra.mxu0 0.0
      %509 = vmatprep.subr.mxu0 0.0
      %510 = vmatpush1.msra.mxu0 0.0
      %511 = vmatprep.subr.mxu0 0.0
      %512 = vmatpush1.msra.mxu0 0.0
      %513 = vmatprep.subr.mxu0 0.0
      %514 = vmatpush1.msra.mxu0 0.0
      %515 = vmatprep.subr.mxu0 0.0
      %516 = vmatpush1.msra.mxu0 0.0
      %517 = vmatprep.subr.mxu0 0.0
      %518 = vmatpush1.msra.mxu0 0.0
      %519 = vmatprep.subr.mxu0 0.0
      %520 = vmatpush1.msra.mxu0 0.0
      %521 = vmatprep.subr.mxu0 0.0
      %522 = vmatpush1.msra.mxu0 0.0
      %523 = vmatprep.subr.mxu0 0.0
      %524 = vmatpush1.msra.mxu0 0.0
      %525 = vmatprep.subr.mxu0 0.0
      %526 = vmatpush1.msra.mxu0 0.0
      %527 = vmatprep.subr.mxu0 0.0
      %528 = vmatpush1.msra.mxu0 0.0
      %529 = vmatprep.subr.mxu0 0.0
      %530 = vmatpush1.msra.mxu0 0.0
      %531 = vmatprep.subr.mxu0 0.0
      %532 = vmatpush1.msra.mxu0 0.0
      %533 = vmatprep.subr.mxu0 0.0
      %534 = vmatpush1.msra.mxu0 0.0
      %535 = vmatprep.subr.mxu0 0.0
      %536 = vmatpush1.msra.mxu0 0.0
      %537 = vmatprep.subr.mxu0 0.0
      %538 = vmatpush1.msra.mxu0 0.0
      %539 = vmatprep.subr.mxu0 0.0
      %540 = vmatpush1.msra.mxu0 0.0
      %541 = vmatprep.subr.mxu0 0.0
      %542 = vmatpush1.msra.mxu0 0.0
      %543 = vmatprep.subr.mxu0 0.0
      %544 = vmatpush1.msra.mxu0 0.0
      %545 = vmatprep.subr.mxu0 0.0
      %546 = vmatpush1.msra.mxu0 0.0
      %547 = vmatprep.subr.mxu0 0.0
      %548 = vmatpush1.msra.mxu0 0.0
      %549 = vmatprep.subr.mxu0 0.0
      %550 = vmatpush1.msra.mxu0 0.0
      %551 = vmatprep.subr.mxu0 0.0
      %552 = vmatpush1.msra.mxu0 0.0
      %553 = vmatprep.subr.mxu0 0.0
      %554 = vmatpush1.msra.mxu0 0.0
      %555 = vmatprep.subr.mxu0 0.0
      %556 = vmatpush1.msra.mxu0 0.0
      %557 = vmatprep.subr.mxu0 0.0
      %558 = vmatpush1.msra.mxu0 0.0
      %559 = vmatprep.subr.mxu0 0.0
      %560 = vmatpush1.msra.mxu0 0.0
      %561 = vmatprep.mubr.f32.mxu0 0.0
      %562 = vmatmul.mubr.f32.gmra.mrb[0].mxu0 %v479
      %v563 = vpop.f32.mrb[0].mxu0
      %v564 = vadd.f32 0.0, %v563
      %v565 = vpop.f32.mrb[0].mxu0
      %v566 = vadd.f32 0.0, %v565
      %567 = vmatprep.mubr.f32.mxu0 0.0
      %568 = vmatmul.mubr.f32.gmra.mrb[0].mxu0 %v482
      %v569 = vpop.f32.mrb[0].mxu0
      %v570 = vadd.f32 0.0, %v569
      %v571 = vpop.f32.mrb[0].mxu0
      %v572 = vadd.f32 0.0, %v571
      %573 = vmatprep.mubr.f32.mxu0 0.0
      %574 = vmatmul.mubr.f32.gmra.mrb[0].mxu0 %v485
      %v575 = vpop.f32.mrb[0].mxu0
      %v576 = vadd.f32 0.0, %v575
      %v577 = vpop.f32.mrb[0].mxu0
      %v578 = vadd.f32 0.0, %v577
      %579 = vmatprep.mubr.f32.mxu0 0.0
      %580 = vmatmul.mubr.f32.gmra.mrb[0].mxu0 %v488
      %v581 = vpop.f32.mrb[0].mxu0
      %v582 = vadd.f32 0.0, %v581
      %v583 = vpop.f32.mrb[0].mxu0
      %v584 = vadd.f32 0.0, %v583
      %585 = vdwg.mxu0
      %vm586 = vcmask 97280
      %v588 = vsel %vm586, %v463, 0
      %v591 = vsel %vm586, %v464, 0
      %v594 = vsel %vm586, %v465, 0
      %v597 = vsel %vm586, %v466, 0
      %vm599 = vcmask 1043456
      %v601 = vsel %vm599, %v469, 0
      %v604 = vsel %vm599, %v470, 0
      %606 = vmatprep.subr.mxu0 %v468
      %607 = vmatpush1.msra.mxu0 %v467
      %608 = vmatprep.subr.mxu0 %v604
      %609 = vmatpush1.msra.mxu0 %v601
      %610 = vmatprep.subr.mxu0 0.0
      %611 = vmatpush1.msra.mxu0 0.0
      %612 = vmatprep.subr.mxu0 0.0
      %613 = vmatpush1.msra.mxu0 0.0
      %614 = vmatprep.subr.mxu0 0.0
      %615 = vmatpush1.msra.mxu0 0.0
      %616 = vmatprep.subr.mxu0 0.0
      %617 = vmatpush1.msra.mxu0 0.0
      %618 = vmatprep.subr.mxu0 0.0
      %619 = vmatpush1.msra.mxu0 0.0
      %620 = vmatprep.subr.mxu0 0.0
      %621 = vmatpush1.msra.mxu0 0.0
      %622 = vmatprep.subr.mxu0 0.0
      %623 = vmatpush1.msra.mxu0 0.0
      %624 = vmatprep.subr.mxu0 0.0
      %625 = vmatpush1.msra.mxu0 0.0
      %626 = vmatprep.subr.mxu0 0.0
      %627 = vmatpush1.msra.mxu0 0.0
      %628 = vmatprep.subr.mxu0 0.0
      %629 = vmatpush1.msra.mxu0 0.0
      %630 = vmatprep.subr.mxu0 0.0
      %631 = vmatpush1.msra.mxu0 0.0
      %632 = vmatprep.subr.mxu0 0.0
      %633 = vmatpush1.msra.mxu0 0.0
      %634 = vmatprep.subr.mxu0 0.0
      %635 = vmatpush1.msra.mxu0 0.0
      %636 = vmatprep.subr.mxu0 0.0
      %637 = vmatpush1.msra.mxu0 0.0
      %638 = vmatprep.subr.mxu0 0.0
      %639 = vmatpush1.msra.mxu0 0.0
      %640 = vmatprep.subr.mxu0 0.0
      %641 = vmatpush1.msra.mxu0 0.0
      %642 = vmatprep.subr.mxu0 0.0
      %643 = vmatpush1.msra.mxu0 0.0
      %644 = vmatprep.subr.mxu0 0.0
      %645 = vmatpush1.msra.mxu0 0.0
      %646 = vmatprep.subr.mxu0 0.0
      %647 = vmatpush1.msra.mxu0 0.0
      %648 = vmatprep.subr.mxu0 0.0
      %649 = vmatpush1.msra.mxu0 0.0
      %650 = vmatprep.subr.mxu0 0.0
      %651 = vmatpush1.msra.mxu0 0.0
      %652 = vmatprep.subr.mxu0 0.0
      %653 = vmatpush1.msra.mxu0 0.0
      %654 = vmatprep.subr.mxu0 0.0
      %655 = vmatpush1.msra.mxu0 0.0
      %656 = vmatprep.subr.mxu0 0.0
      %657 = vmatpush1.msra.mxu0 0.0
      %658 = vmatprep.subr.mxu0 0.0
      %659 = vmatpush1.msra.mxu0 0.0
      %660 = vmatprep.subr.mxu0 0.0
      %661 = vmatpush1.msra.mxu0 0.0
      %662 = vmatprep.subr.mxu0 0.0
      %663 = vmatpush1.msra.mxu0 0.0
      %664 = vmatprep.subr.mxu0 0.0
      %665 = vmatpush1.msra.mxu0 0.0
      %666 = vmatprep.subr.mxu0 0.0
      %667 = vmatpush1.msra.mxu0 0.0
      %668 = vmatprep.subr.mxu0 0.0
      %669 = vmatpush1.msra.mxu0 0.0
      %670 = vmatprep.mubr.f32.mxu0 0.0
      %671 = vmatmul.mubr.f32.gmra.mrb[0].mxu0 %v588
      %v672 = vpop.f32.mrb[0].mxu0
      %v673 = vadd.f32 %v564, %v672
      %v674 = vpop.f32.mrb[0].mxu0
      %v675 = vadd.f32 %v566, %v674
      %676 = vmatprep.mubr.f32.mxu0 0.0
      %677 = vmatmul.mubr.f32.gmra.mrb[0].mxu0 %v591
      %v678 = vpop.f32.mrb[0].mxu0
      %v679 = vadd.f32 %v570, %v678
      %v680 = vpop.f32.mrb[0].mxu0
      %v681 = vadd.f32 %v572, %v680
      %682 = vmatprep.mubr.f32.mxu0 0.0
      %683 = vmatmul.mubr.f32.gmra.mrb[0].mxu0 %v594
      %v684 = vpop.f32.mrb[0].mxu0
      %v685 = vadd.f32 %v576, %v684
      %v686 = vpop.f32.mrb[0].mxu0
      %v687 = vadd.f32 %v578, %v686
      %688 = vmatprep.mubr.f32.mxu0 0.0
      %689 = vmatmul.mubr.f32.gmra.mrb[0].mxu0 %v597
      %v690 = vpop.f32.mrb[0].mxu0
      %v691 = vadd.f32 %v582, %v690
      %v692 = vpop.f32.mrb[0].mxu0
      %v693 = vadd.f32 %v584, %v692
      %694 = vdwg.mxu0
      %v695 = vld [vmem:[%s446] sm:$0xff]
      %v696 = vld [vmem:[%s446 + $0x8] sm:$0xff]
      %v697 = vld [vmem:[%s446 + $0x10] sm:$0xff]
      %v698 = vld [vmem:[%s446 + $0x18] sm:$0xff]
      %700 = vset.pattern.permute.xlu0 0
      %701 = vperm.xlu0 %700, %v695
      %v702 = vpop.permute.xlu0 %701
      %705 = vset.pattern.permute.xlu0 0
      %706 = vperm.xlu0 %705, %v696
      %v707 = vpop.permute.xlu0 %706
      %710 = vset.pattern.permute.xlu0 0
      %711 = vperm.xlu0 %710, %v697
      %v712 = vpop.permute.xlu0 %711
      %715 = vset.pattern.permute.xlu0 0
      %716 = vperm.xlu0 %715, %v698
      %v717 = vpop.permute.xlu0 %716
      %v719 = vadd.f32 %v673, %v702
      %v720 = vadd.f32 %v675, %v702
      %v721 = vadd.f32 %v679, %v707
      %v722 = vadd.f32 %v681, %v707
      %v723 = vadd.f32 %v685, %v712
      %v724 = vadd.f32 %v687, %v712
      %v725 = vadd.f32 %v691, %v717
      %v726 = vadd.f32 %v693, %v717
      %v727 = vtanh.pop %v719
      %v728 = vtanh.pop %v720
      %v729 = vtanh.pop %v721
      %v730 = vtanh.pop %v722
      %v731 = vtanh.pop %v723
      %v732 = vtanh.pop %v724
      %v733 = vtanh.pop %v725
      %v734 = vtanh.pop %v726
      %v735 = vld [vmem:[%s5] sm:$0xff]
      %v736 = vld [vmem:[%s5 + $0x8] sm:$0xff]
      %v737 = vld [vmem:[%s5 + $0x10] sm:$0xff]
      %v738 = vld [vmem:[%s5 + $0x18] sm:$0xff]
      %v739 = vld [vmem:[%s6] sm:$0xff]
      %v740 = vld [vmem:[%s6 + $0x8] sm:$0xff]
      %v741 = vld [vmem:[%s6 + $0x10] sm:$0xff]
      %v742 = vld [vmem:[%s6 + $0x18] sm:$0xff]
      %744 = vset.pattern.permute.xlu0 0
      %745 = vperm.xlu0 %744, %v739
      %v746 = vpop.permute.xlu0 %745
      %749 = vset.pattern.permute.xlu0 0
      %750 = vperm.xlu0 %749, %v740
      %v751 = vpop.permute.xlu0 %750
      %754 = vset.pattern.permute.xlu0 0
      %755 = vperm.xlu0 %754, %v741
      %v756 = vpop.permute.xlu0 %755
      %759 = vset.pattern.permute.xlu0 0
      %760 = vperm.xlu0 %759, %v742
      %v761 = vpop.permute.xlu0 %760
      %vm763 = vcmask 261120
      %v765 = vsel %vm763, %v735, 0
      %v768 = vsel %vm763, %v736, 0
      %v771 = vsel %vm763, %v737, 0
      %v774 = vsel %vm763, %v738, 0
      %776 = vmatprep.subr.mxu0 %v728
      %777 = vmatpush1.msra.mxu0 %v727
      %778 = vmatprep.subr.mxu0 %v730
      %779 = vmatpush1.msra.mxu0 %v729
      %780 = vmatprep.subr.mxu0 %v732
      %781 = vmatpush1.msra.mxu0 %v731
      %782 = vmatprep.subr.mxu0 %v734
      %783 = vmatpush1.msra.mxu0 %v733
      %784 = vmatprep.subr.mxu0 0.0
      %785 = vmatpush1.msra.mxu0 0.0
      %786 = vmatprep.subr.mxu0 0.0
      %787 = vmatpush1.msra.mxu0 0.0
      %788 = vmatprep.subr.mxu0 0.0
      %789 = vmatpush1.msra.mxu0 0.0
      %790 = vmatprep.subr.mxu0 0.0
      %791 = vmatpush1.msra.mxu0 0.0
      %792 = vmatprep.subr.mxu0 0.0
      %793 = vmatpush1.msra.mxu0 0.0
      %794 = vmatprep.subr.mxu0 0.0
      %795 = vmatpush1.msra.mxu0 0.0
      %796 = vmatprep.subr.mxu0 0.0
      %797 = vmatpush1.msra.mxu0 0.0
      %798 = vmatprep.subr.mxu0 0.0
      %799 = vmatpush1.msra.mxu0 0.0
      %800 = vmatprep.subr.mxu0 0.0
      %801 = vmatpush1.msra.mxu0 0.0
      %802 = vmatprep.subr.mxu0 0.0
      %803 = vmatpush1.msra.mxu0 0.0
      %804 = vmatprep.subr.mxu0 0.0
      %805 = vmatpush1.msra.mxu0 0.0
      %806 = vmatprep.subr.mxu0 0.0
      %807 = vmatpush1.msra.mxu0 0.0
      %808 = vmatprep.subr.mxu0 0.0
      %809 = vmatpush1.msra.mxu0 0.0
      %810 = vmatprep.subr.mxu0 0.0
      %811 = vmatpush1.msra.mxu0 0.0
      %812 = vmatprep.subr.mxu0 0.0
      %813 = vmatpush1.msra.mxu0 0.0
      %814 = vmatprep.subr.mxu0 0.0
      %815 = vmatpush1.msra.mxu0 0.0
      %816 = vmatprep.subr.mxu0 0.0
      %817 = vmatpush1.msra.mxu0 0.0
      %818 = vmatprep.subr.mxu0 0.0
      %819 = vmatpush1.msra.mxu0 0.0
      %820 = vmatprep.subr.mxu0 0.0
      %821 = vmatpush1.msra.mxu0 0.0
      %822 = vmatprep.subr.mxu0 0.0
      %823 = vmatpush1.msra.mxu0 0.0
      %824 = vmatprep.subr.mxu0 0.0
      %825 = vmatpush1.msra.mxu0 0.0
      %826 = vmatprep.subr.mxu0 0.0
      %827 = vmatpush1.msra.mxu0 0.0
      %828 = vmatprep.subr.mxu0 0.0
      %829 = vmatpush1.msra.mxu0 0.0
      %830 = vmatprep.subr.mxu0 0.0
      %831 = vmatpush1.msra.mxu0 0.0
      %832 = vmatprep.subr.mxu0 0.0
      %833 = vmatpush1.msra.mxu0 0.0
      %834 = vmatprep.subr.mxu0 0.0
      %835 = vmatpush1.msra.mxu0 0.0
      %836 = vmatprep.subr.mxu0 0.0
      %837 = vmatpush1.msra.mxu0 0.0
      %838 = vmatprep.subr.mxu0 0.0
      %839 = vmatpush1.msra.mxu0 0.0
      %840 = vmatprep.mubr.f32.mxu0 0.0
      %841 = vmatmul.mubr.f32.gmra.mrb[0].mxu0 %v765
      %v842 = vpop.f32.mrb[0].mxu0
      %v843 = vadd.f32 %v746, %v842
      %v844 = vpop.f32.mrb[0].mxu0
      %v845 = vadd.f32 %v746, %v844
      %846 = vmatprep.mubr.f32.mxu0 0.0
      %847 = vmatmul.mubr.f32.gmra.mrb[0].mxu0 %v768
      %v848 = vpop.f32.mrb[0].mxu0
      %v849 = vadd.f32 %v751, %v848
      %v850 = vpop.f32.mrb[0].mxu0
      %v851 = vadd.f32 %v751, %v850
      %852 = vmatprep.mubr.f32.mxu0 0.0
      %853 = vmatmul.mubr.f32.gmra.mrb[0].mxu0 %v771
      %v854 = vpop.f32.mrb[0].mxu0
      %v855 = vadd.f32 %v756, %v854
      %v856 = vpop.f32.mrb[0].mxu0
      %v857 = vadd.f32 %v756, %v856
      %858 = vmatprep.mubr.f32.mxu0 0.0
      %859 = vmatmul.mubr.f32.gmra.mrb[0].mxu0 %v774
      %v860 = vpop.f32.mrb[0].mxu0
      %v861 = vadd.f32 %v761, %v860
      %v862 = vpop.f32.mrb[0].mxu0
      %v863 = vadd.f32 %v761, %v862
      %864 = vdwg.mxu0
      %v865 = vtanh.pop %v843
      %v866 = vtanh.pop %v845
      %v867 = vtanh.pop %v849
      %v868 = vtanh.pop %v851
      %v869 = vtanh.pop %v855
      %v870 = vtanh.pop %v857
      %v871 = vtanh.pop %v861
      %v872 = vtanh.pop %v863
      %v873 = vld [vmem:[%s7] sm:$0xff]
      %v874 = vld [vmem:[%s7 + $0x8] sm:$0xf]
      %v875 = vld [vmem:[%s8] sm:$0xff]
      %v876 = vld [vmem:[%s8 + $0x8] sm:$0xf]
      %878 = vset.pattern.permute.xlu0 0
      %879 = vperm.xlu0 %878, %v875
      %v880 = vpop.permute.xlu0 %879
      %883 = vset.pattern.permute.xlu0 0
      %884 = vperm.xlu0 %883, %v876
      %v885 = vpop.permute.xlu0 %884
      %v888 = vsel %vm763, %v873, 0
      %v891 = vsel %vm763, %v874, 0
      %893 = vmatprep.subr.mxu0 %v866
      %894 = vmatpush1.msra.mxu0 %v865
      %895 = vmatprep.subr.mxu0 %v868
      %896 = vmatpush1.msra.mxu0 %v867
      %897 = vmatprep.subr.mxu0 %v870
      %898 = vmatpush1.msra.mxu0 %v869
      %899 = vmatprep.subr.mxu0 %v872
      %900 = vmatpush1.msra.mxu0 %v871
      %901 = vmatprep.subr.mxu0 0.0
      %902 = vmatpush1.msra.mxu0 0.0
      %903 = vmatprep.subr.mxu0 0.0
      %904 = vmatpush1.msra.mxu0 0.0
      %905 = vmatprep.subr.mxu0 0.0
      %906 = vmatpush1.msra.mxu0 0.0
      %907 = vmatprep.subr.mxu0 0.0
      %908 = vmatpush1.msra.mxu0 0.0
      %909 = vmatprep.subr.mxu0 0.0
      %910 = vmatpush1.msra.mxu0 0.0
      %911 = vmatprep.subr.mxu0 0.0
      %912 = vmatpush1.msra.mxu0 0.0
      %913 = vmatprep.subr.mxu0 0.0
      %914 = vmatpush1.msra.mxu0 0.0
      %915 = vmatprep.subr.mxu0 0.0
      %916 = vmatpush1.msra.mxu0 0.0
      %917 = vmatprep.subr.mxu0 0.0
      %918 = vmatpush1.msra.mxu0 0.0
      %919 = vmatprep.subr.mxu0 0.0
      %920 = vmatpush1.msra.mxu0 0.0
      %921 = vmatprep.subr.mxu0 0.0
      %922 = vmatpush1.msra.mxu0 0.0
      %923 = vmatprep.subr.mxu0 0.0
      %924 = vmatpush1.msra.mxu0 0.0
      %925 = vmatprep.subr.mxu0 0.0
      %926 = vmatpush1.msra.mxu0 0.0
      %927 = vmatprep.subr.mxu0 0.0
      %928 = vmatpush1.msra.mxu0 0.0
      %929 = vmatprep.subr.mxu0 0.0
      %930 = vmatpush1.msra.mxu0 0.0
      %931 = vmatprep.subr.mxu0 0.0
      %932 = vmatpush1.msra.mxu0 0.0
      %933 = vmatprep.subr.mxu0 0.0
      %934 = vmatpush1.msra.mxu0 0.0
      %935 = vmatprep.subr.mxu0 0.0
      %936 = vmatpush1.msra.mxu0 0.0
      %937 = vmatprep.subr.mxu0 0.0
      %938 = vmatpush1.msra.mxu0 0.0
      %939 = vmatprep.subr.mxu0 0.0
      %940 = vmatpush1.msra.mxu0 0.0
      %941 = vmatprep.subr.mxu0 0.0
      %942 = vmatpush1.msra.mxu0 0.0
      %943 = vmatprep.subr.mxu0 0.0
      %944 = vmatpush1.msra.mxu0 0.0
      %945 = vmatprep.subr.mxu0 0.0
      %946 = vmatpush1.msra.mxu0 0.0
      %947 = vmatprep.subr.mxu0 0.0
      %948 = vmatpush1.msra.mxu0 0.0
      %949 = vmatprep.subr.mxu0 0.0
      %950 = vmatpush1.msra.mxu0 0.0
      %951 = vmatprep.subr.mxu0 0.0
      %952 = vmatpush1.msra.mxu0 0.0
      %953 = vmatprep.subr.mxu0 0.0
      %954 = vmatpush1.msra.mxu0 0.0
      %955 = vmatprep.subr.mxu0 0.0
      %956 = vmatpush1.msra.mxu0 0.0
      %957 = vmatprep.mubr.f32.mxu0 0.0
      %958 = vmatmul.mubr.f32.gmra.mrb[0].mxu0 %v888
      %v959 = vpop.f32.mrb[0].mxu0
      %v960 = vadd.f32 %v880, %v959
      %v961 = vpop.f32.mrb[0].mxu0
      %v962 = vadd.f32 %v880, %v961
      %963 = vmatprep.mubr.f32.mxu0 0.0
      %964 = vmatmul.mubr.f32.gmra.mrb[0].mxu0 %v891
      %v965 = vpop.f32.mrb[0].mxu0
      %v966 = vadd.f32 %v885, %v965
      %v967 = vpop.f32.mrb[0].mxu0
      %v968 = vadd.f32 %v885, %v967
      %969 = vdwg.mxu0
      %v970 = vld [vmem:[%s451] sm:$0x77]
      %v972 = vlaneseq
      %v973 = vshrl.u32 %v972, 7
      %v974 = vsub.s32 0, %v973
      %v975 = vrot.slane %v970, %v974
      %v976 = vlaneseq
      %v977 = vshrl.u32 %v976, 7
      %v978 = vsub.s32 4, %v977
      %v979 = vrot.slane %v970, %v978
      %v982 = vlaneseq
      %v983 = vshrl.u32 %v982, 7
      %v984 = vsub.s32 0, %v983
      %v985 = vrot.slane %v975, %v984
      %v986 = vlaneseq
      %v987 = vshrl.u32 %v986, 7
      %v988 = vsub.s32 0, %v987
      %v989 = vrot.slane %v979, %v988
      %v990 = vlaneseq
      %v991 = vshrl.u32 %v990, 7
      %v992 = vsub.s32 1, %v991
      %v993 = vrot.slane %v970, %v992
      %v994 = vlaneseq
      %v995 = vshrl.u32 %v994, 7
      %v996 = vsub.s32 5, %v995
      %v997 = vrot.slane %v970, %v996
      %v1000 = vlaneseq
      %v1001 = vshrl.u32 %v1000, 7
      %v1002 = vsub.s32 1, %v1001
      %v1003 = vrot.slane %v993, %v1002
      %v1004 = vlaneseq
      %v1005 = vshrl.u32 %v1004, 7
      %v1006 = vsub.s32 1, %v1005
      %v1007 = vrot.slane %v997, %v1006
      %v1008 = vlaneseq
      %v1009 = vshrl.u32 %v1008, 7
      %v1010 = vsub.s32 2, %v1009
      %v1011 = vrot.slane %v970, %v1010
      %v1012 = vlaneseq
      %v1013 = vshrl.u32 %v1012, 7
      %v1014 = vsub.s32 6, %v1013
      %v1015 = vrot.slane %v970, %v1014
      %v1018 = vlaneseq
      %v1019 = vshrl.u32 %v1018, 7
      %v1020 = vsub.s32 2, %v1019
      %v1021 = vrot.slane %v1011, %v1020
      %v1022 = vlaneseq
      %v1023 = vshrl.u32 %v1022, 7
      %v1024 = vsub.s32 2, %v1023
      %v1025 = vrot.slane %v1015, %v1024
      %v1026 = vsel %vm599, %v985, %v1003
      %v1027 = vsel %vm599, %v989, %v1007
      %v1028 = vmul.f32 %v960, %v1026
      %v1029 = vmul.f32 %v962, %v1027
      %v1030 = vmul.f32 %v966, %v1021
      %v1031 = vmul.f32 %v968, %v1025
      %1032 = vst [vmem:[%s461] sm:$0xff] %v1028
      %1033 = vst [vmem:[%s461 + $0x8] sm:$0xff] %v1029
      %1034 = vst [vmem:[%s461 + $0x10] sm:$0xf] %v1030
      %1035 = vst [vmem:[%s461 + $0x18] sm:$0xf] %v1031
      %s1036 = smul.u32 2, %s25
      %p1037 = scmp.lt.s32.totalorder %s26, 1
      %s1038 = scalar_select %p1037, %s26, 1
      %p1039 = scmp.lt.s32.totalorder %s1036, 1
      %s1040 = scalar_select %p1039, %s1036, 1
      %s1041 = smul.addr %s1038, 4
      %s1042 = sadd.s32 %s1040, %s1041
      %s1043 = smul.addr %s1042, 8
      %s1044 = scalar_lea.vmem %s10, %s1043
      // Predicated region
      $region61: #{tpu_custom_call.1} parent=59 // pred_check
        %p1045 = pneg %p285
      $region62: #{tpu_custom_call.1} parent=59 // pred_check_branch
        %1047 = sbr.rel (%p1045) target = $region64
      $region63: #{tpu_custom_call.1} parent=59 // pred_region
        %s1048 = smul.u32 2, %s25
      $region64: #{tpu_custom_call.1} parent=59 // pred_fallthru
        _
    $region60: #{tpu_custom_call.1} parent=5 // pred_fallthru
      _
    %p1049 = scmp.le.s32.totalorder 2, %s16
    // Predicated region
    $region65: #{tpu_custom_call.1} parent=5 // pred_check
      %p1050 = pneg %p1049
    $region66: #{tpu_custom_call.1} parent=5 // pred_check_branch
      %1052 = sbr.rel (%p1050) target = $region68
    $region67: #{tpu_custom_call.1} parent=5 // pred_region
      %s1053 = ssub.s32 %s16, 2
      // Predicated region
      $region69: #{tpu_custom_call.1} parent=67 // pred_check
        %p1054 = pneg %p291
      $region70: #{tpu_custom_call.1} parent=67 // pred_check_branch
        %1056 = sbr.rel (%p1054) target = $region72
      $region71: #{tpu_custom_call.1} parent=67 // pred_region
        %s1057 = smul.u32 2, %s27
        %p1058 = scmp.lt.s32.totalorder %s28, 1
        %s1059 = scalar_select %p1058, %s28, 1
        %p1060 = scmp.lt.s32.totalorder %s1057, 1
        %s1061 = scalar_select %p1060, %s1057, 1
        %s1062 = smul.addr %s1059, 4
        %s1063 = sadd.s32 %s1061, %s1062
        %s1064 = smul.addr %s1063, 8
        %s1065 = scalar_lea.vmem %s10, %s1064
      $region72: #{tpu_custom_call.1} parent=67 // pred_fallthru
        _
    $region68: #{tpu_custom_call.1} parent=5 // pred_fallthru
      _
  $region6: #{tpu_custom_call.1} parent=0 // loop_footer
    %s20 = sadd.s32 1, %s16
  $region7: #{tpu_custom_call.1} parent=0 // loop_footer_branch
    %15 = sbr.rel target = $region3
  $region8: #{tpu_custom_call.1} parent=0 // loop_exit
    _

</llo_original>
